<compile_context>
chip_gen: v6e
topology: v6e:2x2x1
jax: 0.10.0
libtpu: 0.0.40
codegen_flags: <defaults>
</compile_context>

<pallas_src>
import math
import numpy as np
import jax
import jax.numpy as jnp
from jax.experimental import pallas as pl
from jax.experimental.pallas import tpu as pltpu


def _round_up(x, m):
    return (x + m - 1) // m * m


# ---------------------------------------------------------------------------
# Kernel 1: GEMM + bias with the weight matrix and bias fully VMEM-resident.
# ---------------------------------------------------------------------------
def _matmul_bias_kernel(a_ref, b_ref, bias_ref, o_ref):
    acc = jnp.dot(a_ref[...], b_ref[...], preferred_element_type=jnp.float32)
    o_ref[...] = (acc + bias_ref[...]).astype(o_ref.dtype)


def matmul_bias(a, b, bias, *, compute_dtype=jnp.bfloat16, tm=512):
    """(M, K) @ (K, N) + bias, f32 accumulation / f32 output.

    1-D grid over M tiles (plus a trivial N axis that only splits if the
    weight matrix itself would not fit in VMEM).  A is read from HBM exactly
    once; B and bias are VMEM-resident (constant index_map); K and N are not
    padded; partial edge M tiles are handled by Pallas' boundary clamping.
    """
    M, K = a.shape
    K2, N = b.shape
    assert K == K2 and bias.shape == (N,)
    cd = jnp.dtype(compute_dtype)

    a_c = a.astype(cd)
    b_c = b.astype(cd)
    bias_c = bias.astype(jnp.float32).reshape(1, N)

    # Degenerate tiny-K hedge only (real ch_in is always a multiple of 8).
    if K % 8 != 0:
        Kp = _round_up(K, 8)
        a_c = jnp.pad(a_c, ((0, 0), (0, Kp - K)))
        b_c = jnp.pad(b_c, ((0, Kp - K), (0, 0)))
        K = Kp

    # N tiling: a single full-N resident block in the common case; fall back
    # to 128-aligned N tiles only if B itself would not fit in VMEM.
    if K * N * cd.itemsize <= 16 * 2**20:
        tn = N
    else:
        tn = max(128, ((16 * 2**20) // (K * cd.itemsize)) // 128 * 128)
    ntn = pl.cdiv(N, tn)

    # M tiling: big tiles, but keep >= 2 tiles when possible so the parallel
    # axis shards across both v7x TensorCores.
    if M >= 16:
        ntm = max(2, pl.cdiv(M, tm))
    else:
        ntm = 1
    tm = _round_up(pl.cdiv(M, ntm), 8)

    def vmem_est(tm_):
        return 2 * (tm_ * K * cd.itemsize + tm_ * tn * 4
                    + K * tn * cd.itemsize + tn * 4)

    while vmem_est(tm) > 40 * 2**20 and tm > 64:   # v7x (64 MiB VMEM) budget
        tm = _round_up(max(tm // 2, 64), 8)
    ntm = pl.cdiv(M, tm)
    grid = (ntm, ntn)

    cost = pl.CostEstimate(
        flops=2 * M * K * N,
        transcendentals=0,
        bytes_accessed=(M * K * cd.itemsize
                        + (ntm if ntn > 1 else 1) * K * N * cd.itemsize
                        + M * N * 4 + N * 4),
    )

    out = pl.pallas_call(
        _matmul_bias_kernel,
        out_shape=jax.ShapeDtypeStruct((M, N), jnp.float32),
        grid=grid,
        in_specs=[
            pl.BlockSpec((tm, K), lambda i, j: (i, 0)),   # A: streamed once
            pl.BlockSpec((K, tn), lambda i, j: (0, j)),   # B: VMEM-resident
            pl.BlockSpec((1, tn), lambda i, j: (0, j)),   # bias: VMEM-resident
        ],
        out_specs=pl.BlockSpec((tm, tn), lambda i, j: (i, j)),
        compiler_params=pltpu.CompilerParams(
            dimension_semantics=("parallel", "parallel"),
            vmem_limit_bytes=int(min(max(vmem_est(tm) * 3 // 2, 32 * 2**20),
                                     48 * 2**20)),
        ),
        cost_estimate=cost,
    )(a_c, b_c, bias_c)
    return out


# ---------------------------------------------------------------------------
# up_conv: ConvTranspose2d(ch_in, ch_in//2, kernel_size=2, stride=2) path
# ---------------------------------------------------------------------------
def conv_transpose_2x2_s2(x_nchw, w, b, *, compute_dtype=jnp.bfloat16):
    """Exact ConvTranspose2d(k=2, s=2); w is PyTorch layout (Cin, Cout, 2, 2)."""
    N, Cin, H, W = x_nchw.shape
    Cout = w.shape[1]
    # out[n, co, 2h+kh, 2w+kw] = sum_ci x[n,ci,h,w] * w[ci,co,kh,kw] + b[co]
    a = jnp.transpose(x_nchw.astype(compute_dtype), (0, 2, 3, 1))
    a = a.reshape(N * H * W, Cin)
    b_mat = jnp.transpose(w, (0, 2, 3, 1)).reshape(Cin, 4 * Cout)  # cols=(kh,kw,co)
    bias_cols = jnp.tile(b, 4)
    y = matmul_bias(a, b_mat, bias_cols, compute_dtype=compute_dtype)
    # Single fused permute straight to NCHW: (n,h,w,kh,kw,co)->(n,co,h,kh,w,kw)
    y = y.reshape(N, H, W, 2, 2, Cout)
    y = jnp.transpose(y, (0, 5, 1, 3, 2, 4)).reshape(N, Cout, 2 * H, 2 * W)
    return y


# ---------------------------------------------------------------------------
# up_conv: bilinear x2, align_corners=True path (single fused kernel)
# ---------------------------------------------------------------------------
def _interp_matrix_x2(n_in):
    """Static interpolation matrix R (2*n_in, n_in): out = R @ in (align_corners)."""
    n_out = 2 * n_in
    if n_in == 1:
        return np.ones((n_out, 1), np.float32)
    s = np.arange(n_out, dtype=np.float64) * (n_in - 1) / (n_out - 1)
    i0 = np.minimum(np.floor(s).astype(np.int64), n_in - 1)
    i1 = np.minimum(i0 + 1, n_in - 1)
    frac = (s - i0).astype(np.float32)
    R = np.zeros((n_out, n_in), np.float32)
    R[np.arange(n_out), i0] += 1.0 - frac
    R[np.arange(n_out), i1] += frac
    return R


def _bilinear_up2_kernel(x_ref, ry_ref, rxt_ref, o_ref):
    bc = x_ref.shape[0]
    cd = ry_ref.dtype                                            # compute dtype
    x = x_ref[...].astype(cd)                                    # (bc, H, W)
    rxt = jnp.broadcast_to(rxt_ref[...], (bc,) + rxt_ref.shape)  # (bc, W, 2W)
    t = jnp.einsum('bhw,bwx->bhx', x, rxt,
                   preferred_element_type=jnp.float32)           # (bc, H, 2W) f32
    ry = jnp.broadcast_to(ry_ref[...], (bc,) + ry_ref.shape)     # (bc, 2H, H)
    o = jnp.einsum('byh,bhx->byx', ry, t.astype(cd),
                   preferred_element_type=jnp.float32)           # (bc, 2H, 2W)
    o_ref[...] = o.astype(o_ref.dtype)


def bilinear_up2_nchw(x_nchw, *, compute_dtype=jnp.bfloat16):
    """nn.Upsample(scale_factor=2, mode='bilinear', align_corners=True), NCHW."""
    N, C, H, W = x_nchw.shape
    NC = N * C
    ry = jnp.asarray(_interp_matrix_x2(H)).astype(compute_dtype)       # (2H, H)
    rxt = jnp.asarray(_interp_matrix_x2(W).T).astype(compute_dtype)    # (W, 2W)
    x = x_nchw.reshape(NC, H, W)      # pure reshape; streamed in its own dtype

    # Block of images: keep the f32 output block around <= 2 MiB and >= 2 grid
    # steps (when possible) so both v7x TensorCores get work.
    out_img_bytes = 4 * H * W * 4
    bc = max(1, (2 * 2**20) // out_img_bytes)
    nb = pl.cdiv(NC, bc)
    if NC >= 2:
        nb = max(2, nb)
    bc = pl.cdiv(NC, nb)
    grid = (pl.cdiv(NC, bc),)

    x_bytes = jnp.dtype(x.dtype).itemsize
    cd_bytes = jnp.dtype(compute_dtype).itemsize
    vmem_est = (2 * (bc * H * W * x_bytes + bc * 4 * H * W * 4)
                + (1 + bc) * (2 * H * H + 2 * W * W) * cd_bytes
                + bc * 2 * H * W * 4 * 2)
    cost = pl.CostEstimate(
        flops=2 * NC * (2 * H * H * W + 2 * W * W * 2 * H),
        transcendentals=0,
        bytes_accessed=(NC * H * W * x_bytes + NC * 4 * H * W * 4
                        + (2 * H * H + 2 * W * W) * cd_bytes),
    )

    out = pl.pallas_call(
        _bilinear_up2_kernel,
        out_shape=jax.ShapeDtypeStruct((NC, 2 * H, 2 * W), jnp.float32),
        grid=grid,
        in_specs=[
            pl.BlockSpec((bc, H, W), lambda i: (i, 0, 0)),
            pl.BlockSpec((2 * H, H), lambda i: (0, 0)),    # Ry: VMEM-resident
            pl.BlockSpec((W, 2 * W), lambda i: (0, 0)),    # Rx^T: VMEM-resident
        ],
        out_specs=pl.BlockSpec((bc, 2 * H, 2 * W), lambda i: (i, 0, 0)),
        compiler_params=pltpu.CompilerParams(
            dimension_semantics=("parallel",),
            vmem_limit_bytes=int(min(max(vmem_est * 3 // 2, 32 * 2**20),
                                     48 * 2**20)),
        ),
        cost_estimate=cost,
    )(x, ry, rxt)
    return out.reshape(N, C, 2 * H, 2 * W)


# ---------------------------------------------------------------------------
# Public forward (NCHW in / NCHW out, like the PyTorch module)
# ---------------------------------------------------------------------------
def up_conv_forward(x_nchw, params=None, *, bilinear=False,
                    compute_dtype=jnp.bfloat16):
    """compute_dtype controls MXU operand dtype only; accumulation and output
    are always float32.  Pass jnp.float32 for bit-level PyTorch fidelity."""
    x = x_nchw.astype(jnp.float32)
    if bilinear:
        return bilinear_up2_nchw(x, compute_dtype=compute_dtype)
    return conv_transpose_2x2_s2(x, params["w"], params["b"],
                                 compute_dtype=compute_dtype)


def init_up_conv_params(key, ch_in):
    """PyTorch ConvTranspose2d default init (kaiming_uniform, a=sqrt(5))."""
    ch_out = ch_in // 2
    k1, k2 = jax.random.split(key)
    fan_in = ch_out * 2 * 2          # weight.size(1) * kh * kw for ConvTranspose
    bound = 1.0 / math.sqrt(fan_in)
    w = jax.random.uniform(k1, (ch_in, ch_out, 2, 2), jnp.float32,
                           minval=-bound, maxval=bound)
    b = jax.random.uniform(k2, (ch_out,), jnp.float32,
                           minval=-bound, maxval=bound)
    return {"w": w, "b": b}


# ---------------------------------------------------------------------------
# Plain-JAX references (self-check only)
# ---------------------------------------------------------------------------
def _deconv_ref_nchw(x_nchw, w, b):
    N, Cin, H, W = x_nchw.shape
    Cout = w.shape[1]
    y = jnp.einsum("nihw,iokl->nohkwl", x_nchw, w)
    return y.reshape(N, Cout, 2 * H, 2 * W) + b[None, :, None, None]


def _bilinear_ref_nchw(x_nchw):
    x = jnp.transpose(x_nchw, (0, 2, 3, 1))
    N, H, W, C = x.shape
    sy = jnp.arange(2 * H, dtype=jnp.float32) * (H - 1) / (2 * H - 1)
    sx = jnp.arange(2 * W, dtype=jnp.float32) * (W - 1) / (2 * W - 1)
    y0 = jnp.floor(sy).astype(jnp.int32); y1 = jnp.minimum(y0 + 1, H - 1)
    wy = (sy - y0.astype(jnp.float32))[None, :, None, None]
    x0 = jnp.floor(sx).astype(jnp.int32); x1 = jnp.minimum(x0 + 1, W - 1)
    wx = (sx - x0.astype(jnp.float32))[None, None, :, None]
    rows = x[:, y0] * (1.0 - wy) + x[:, y1] * wy
    out = rows[:, :, x0] * (1.0 - wx) + rows[:, :, x1] * wx
    return jnp.transpose(out, (0, 3, 1, 2))


if __name__ == "__main__":
    key = jax.random.PRNGKey(0)
    pkey, xkey = jax.random.split(key)

    batch, ch_in, hw = 2, 4, 16
    x = jax.random.normal(xkey, (batch, ch_in, hw, hw), dtype=jnp.float32)
    params = init_up_conv_params(pkey, ch_in)

    # --- default path: ConvTranspose2d(ch_in, ch_in//2, k=2, s=2) ---
    ref = _deconv_ref_nchw(x, params["w"], params["b"])

    fwd_deconv = jax.jit(lambda x, p: up_conv_forward(x, p, bilinear=False))
    out = jax.block_until_ready(fwd_deconv(x, params))          # bf16 fast path
    assert out.shape == (batch, ch_in // 2, 2 * hw, 2 * hw), out.shape
    assert bool(jnp.all(jnp.isfinite(out)))
    assert bool(jnp.allclose(out, ref, atol=1e-1, rtol=1e-1)), \
        float(jnp.max(jnp.abs(out - ref)))

    fwd_deconv32 = jax.jit(lambda x, p: up_conv_forward(
        x, p, bilinear=False, compute_dtype=jnp.float32))        # exact path
    out32 = jax.block_until_ready(fwd_deconv32(x, params))
    assert bool(jnp.allclose(out32, ref, atol=1e-4, rtol=1e-4)), \
        float(jnp.max(jnp.abs(out32 - ref)))

    # --- bilinear=True path: Upsample(x2, bilinear, align_corners=True) ---
    ref_b = _bilinear_ref_nchw(x)

    fwd_bilin = jax.jit(lambda x: up_conv_forward(x, bilinear=True))
    out_b = jax.block_until_ready(fwd_bilin(x))                  # bf16 fast path
    assert out_b.shape == (batch, ch_in, 2 * hw, 2 * hw), out_b.shape
    assert bool(jnp.all(jnp.isfinite(out_b)))
    assert bool(jnp.allclose(out_b, ref_b, atol=1e-1, rtol=1e-1)), \
        float(jnp.max(jnp.abs(out_b - ref_b)))

    fwd_bilin32 = jax.jit(lambda x: up_conv_forward(
        x, bilinear=True, compute_dtype=jnp.float32))            # exact path
    out_b32 = jax.block_until_ready(fwd_bilin32(x))
    assert bool(jnp.allclose(out_b32, ref_b, atol=1e-4, rtol=1e-4)), \
        float(jnp.max(jnp.abs(out_b32 - ref_b)))

    print("KERNEL_OK")
</pallas_src>

<mosaic_0001>
module attributes {stable_mosaic.version = 11 : i64} {
  func.func @_matmul_bias_kernel(%arg0: i32, %arg1: i32, %arg2: memref<256x8xbf16, #tpu.memory_space<vmem>>, %arg3: memref<8x8xbf16, #tpu.memory_space<vmem>>, %arg4: memref<1x8xf32, #tpu.memory_space<vmem>>, %arg5: memref<256x8xf32, #tpu.memory_space<vmem>>) attributes {dimension_semantics = [#tpu.dimension_semantics<parallel>, #tpu.dimension_semantics<parallel>], iteration_bounds = array<i64: 2, 1>, scalar_prefetch = 0 : i64, scratch_operands = 0 : i64, tpu.core_type = #tpu.core_type<tc>, window_params = [{transform_indices = @transform_0, window_bounds = array<i64: 256, 8>}, {transform_indices = @transform_1, window_bounds = array<i64: 8, 8>}, {transform_indices = @transform_2, window_bounds = array<i64: 1, 8>}, {transform_indices = @transform_3, window_bounds = array<i64: 256, 8>}]} {
    %c0 = arith.constant 0 : index
    %c0_0 = arith.constant 0 : index
    %0 = vector.load %arg2[%c0, %c0_0] : memref<256x8xbf16, #tpu.memory_space<vmem>>, vector<256x8xbf16>
    %c0_1 = arith.constant 0 : index
    %c0_2 = arith.constant 0 : index
    %1 = vector.load %arg3[%c0_1, %c0_2] : memref<8x8xbf16, #tpu.memory_space<vmem>>, vector<8x8xbf16>
    %cst = arith.constant dense<0.000000e+00> : vector<256x8xf32>
    %2 = tpu.matmul %0, %1, %cst {dimension_numbers = #tpu.dot_dimension_numbers<[1], [0], [0], [1], [0, 0, 1, 1], [], []>} : vector<256x8xbf16>, vector<8x8xbf16>, vector<256x8xf32> -> vector<256x8xf32>
    %c0_3 = arith.constant 0 : index
    %c0_4 = arith.constant 0 : index
    %3 = vector.load %arg4[%c0_3, %c0_4] : memref<1x8xf32, #tpu.memory_space<vmem>>, vector<1x8xf32>
    %4 = vector.broadcast %3 : vector<1x8xf32> to vector<256x8xf32>
    %5 = arith.addf %2, %4 : vector<256x8xf32>
    %c0_5 = arith.constant 0 : index
    %c0_6 = arith.constant 0 : index
    %6 = vector.load %arg5[%c0_5, %c0_6] : memref<256x8xf32, #tpu.memory_space<vmem>>, vector<256x8xf32>
    tpu.vector_store %arg5[%c0_5, %c0_6], %5 {strides = array<i32>} : memref<256x8xf32, #tpu.memory_space<vmem>>, vector<256x8xf32>,
    return
  }
  func.func @transform_0(%arg0: i32, %arg1: i32) -> (i32, i32) {
    %c0_i32 = arith.constant 0 : i32
    %c0_i32_0 = arith.constant 0 : i32
    return %arg0, %c0_i32 : i32, i32
  }
  func.func @transform_1(%arg0: i32, %arg1: i32) -> (i32, i32) {
    %c0_i32 = arith.constant 0 : i32
    %c0_i32_0 = arith.constant 0 : i32
    return %c0_i32, %arg1 : i32, i32
  }
  func.func @transform_2(%arg0: i32, %arg1: i32) -> (i32, i32) {
    %c0_i32 = arith.constant 0 : i32
    %c0_i32_0 = arith.constant 0 : i32
    return %c0_i32, %arg1 : i32, i32
  }
  func.func @transform_3(%arg0: i32, %arg1: i32) -> (i32, i32) {
    %c0_i32 = arith.constant 0 : i32
    return %arg0, %arg1 : i32, i32
  }
}

</mosaic_0001>

<llo_original>
// kernel: tile.9
$region0: #{tile.9}
  %s0 = inlined_call_operand.vmem [shape: f32[4,2], index: 0, kind: input, shape index: {}]
  %s1 = inlined_call_operand.vmem [shape: f32[1,8], index: 1, kind: output, shape index: {}]
  $region1: #{tile.9} parent=0
    #allocation0 [shape = 'u8[4096]{0}', space=vmem, size = 0x1000, scoped, tag = 'scoped mem for output reshape']
    #allocation1 [shape = 'u8[4096]{0}', space=vmem, size = 0x1000, scoped, tag = 'scoped mem for input reshape']
    %s3 = sshll.u32 1, 4
    %s4 = ssub.s32 %s3, 1
    %v5 = vld [vmem:[%s0] sm:%s4]
    %6 = vst [vmem:[#allocation1] sm:%s4] %v5
    %v7 = vld [vmem:[#allocation1] sm:$0x1]
    %vm8 = vcmask 15360
    %9 = vst.msk [vmem:[#allocation0] sm:$0x1] %vm8, %v7
    %s10 = scalar_lea.vmem [#allocation1], 3
    %v11 = vld [vmem:[%s10] sm:$0x1]
    %12 = vrot.lane.b32.xlu0 %v11, 6
    %v13 = vpop.permute.xlu0 %12
    %vm14 = vcmask 64560
    %15 = vst.msk [vmem:[#allocation0] sm:$0x1] %vm14, %v13
    %s16 = scalar_lea.vmem [#allocation1], 2
    %v17 = vld [vmem:[%s16] sm:$0x1]
    %18 = vrot.lane.b32.xlu0 %v17, 4
    %v19 = vpop.permute.xlu0 %18
    %vm20 = vcmask 48160
    %21 = vst.msk [vmem:[#allocation0] sm:$0x1] %vm20, %v19
    %s22 = scalar_lea.vmem [#allocation1], 1
    %v23 = vld [vmem:[%s22] sm:$0x1]
    %24 = vrot.lane.b32.xlu0 %v23, 2
    %v25 = vpop.permute.xlu0 %24
    %vm26 = vcmask 31760
    %27 = vst.msk [vmem:[#allocation0] sm:$0x1] %vm26, %v25
    %s29 = sshll.u32 1, 1
    %s30 = ssub.s32 %s29, 1
    %v32 = vld [vmem:[#allocation0] sm:%s30]
    %s33 = sshll.u32 1, 1
    %s34 = ssub.s32 %s33, 1
    %35 = vst [vmem:[%s1] sm:%s34] %v32

// kernel: tile.8
$region0: #{tile.8}
  #allocation2 [shape = 's32[1]{0}', space=sflag, size = 0x4, scoped, tag = 'scoped memory for tile.8']
  %s0 = inlined_call_operand.hbm [shape: f32[2], index: 0, kind: input, shape index: {}]
  %s1 = inlined_call_operand.vmem [shape: f32[4,2], index: 1, kind: output, shape index: {}]
  $region1: #{tile.8} parent=0
    #allocation0 [shape = 'u8[512]{0}', space=vmem, size = 0x400, scoped, tag = 'operand span for operand 0']
    #allocation1 [shape = 's32[1]{0}', space=sflag, size = 0x4, scoped, tag = 'scoped memory for tile.8']
    %2 = vsyncpa [#allocation1], 0
    // Predicated region
    $region2: #{tile.8} parent=1 // pred_check
      _
    $region3: #{tile.8} parent=1 // pred_check_branch
      %4 = sbr.rel (0) target = $region5
    $region4: #{tile.8} parent=1 // pred_region
      %s6 = ssub.s32 16, 16
      %7 = vsyncadd [#allocation1], %s6
      %s9 = sshll.u32 [#allocation0], 4
      %s10 = int_to_ptr.vmem [resolvable:$true] %s9
      %12 = dma.hbm_to_vmem [thread:$0]  %s0, 16, %s10, [#allocation1]
    $region5: #{tile.8} parent=1 // pred_fallthru
      _
    // Predicated region
    $region6: #{tile.8} parent=1 // pred_check
      _
    $region7: #{tile.8} parent=1 // pred_check_branch
      %14 = sbr.rel (0) target = $region9
    $region8: #{tile.8} parent=1 // pred_region
      %15 = dma.done [#allocation1], 16
    $region9: #{tile.8} parent=1 // pred_fallthru
      _
    %v16 = vld [vmem:[#allocation0] ss:$0 sm:$0xff]
    %17 = vst [vmem:[%s1] sm:$0xf] %v16
    %18 = vsyncpa [#allocation1], 1

// kernel: _lambda_.1
$region0: #{_lambda_.1}
  #allocation0 [shape = 'u32[]', space=smem, size = 0x4, offset = 0x4, fixed_abs, tag = 'smem constant byte address 0x4 - core index']
  #allocation1 [shape = 'u32[144,128]{1,0:T(1,128)}', space=vmem, size = 0x12000, scoped, tag = 'internal scratch']
  %s0 = inlined_call_operand.vmem [shape: bf16[512,8], index: 0, kind: input, shape index: {}]
  %s1 = inlined_call_operand.vmem [shape: bf16[8,8], index: 1, kind: input, shape index: {}]
  %s2 = inlined_call_operand.vmem [shape: f32[1,8], index: 2, kind: input, shape index: {}]
  %s3 = inlined_call_operand.vmem [shape: f32[512,8], index: 3, kind: output, shape index: {}]
  %s4 = sld [smem:[#allocation0]]
  $region45: #{_lambda_.1} parent=0
    _
  %s6 = ssub.s32 1, %s4
  %s7 = scalar_select 0, %s6, %s4
  loop: start=0, step=1, limit=4
  $region2: #{_lambda_.1} parent=0 // loop_pre_header
    _
  $region3: #{_lambda_.1} parent=0 // loop_header
    %s9 = sphi 0, %s13
    %p10 = scmp.ge.s32.totalorder %s9, 4
    %s16 = sphi 0, %s28
    %s17 = sphi 0, %s24
    %s18 = sphi 0, %s16
    %s19 = sphi 0, %s17
    %s20 = sphi 0, %s18
    %s21 = sphi 0, %s19
    %s31 = sphi 0, %s33
    %s34 = sphi 0, %s31
    %s35 = sphi 0, %s34
    %s51 = sphi 0, %s35
    %s57 = sphi 0, %s59
    %s60 = sphi 0, %s57
    %s61 = sphi 0, %s60
    %s77 = sphi 0, %s61
    %s83 = sphi 0, %s85
    %s86 = sphi 0, %s83
    %s87 = sphi 0, %s86
    %s103 = sphi 0, %s87
    %s111 = sphi 0, %s113
    %s114 = sphi 0, %s111
    %s115 = sphi 0, %s114
    %s131 = sphi 0, %s115
  $region4: #{_lambda_.1} parent=0 // loop_header_branch
    %12 = sbr.rel (%p10) target = $region8
  $region5: #{_lambda_.1} parent=0 // loop_body
    %s14 = ssub.s32 %s9, 1
    %s15 = ssub.s32 %s9, 2
    %s22 = sadd.s32 1, %s17
    %p23 = scmp.ge.s32.totalorder %s22, 1
    %s24 = scalar_select %p23, 0, %s22
    %s25 = sadd.s32 1, %s16
    %s26 = scalar_select %p23, %s25, %s16
    %p27 = scmp.ge.s32.totalorder %s26, 2
    %s28 = scalar_select %p27, 0, %s26
    %s29 = ssub.s32 %s16, %s28
    %p30 = scmp.eq.s32.totalorder %s29, 0
    %s32 = sadd.s32 %s31, 1
    %s33 = scalar_select %p30, %s31, %s32
    %p36 = pneg %p30
    %p37 = scmp.eq.s32.totalorder %s9, 1
    %p38 = por %p36, %p37
    %p39 = scmp.ne.s32.totalorder %s31, %s34
    %p40 = scmp.eq.s32.totalorder %s9, 0
    %p41 = por %p39, %p40
    %p42 = scmp.ne.s32.totalorder %s31, %s34
    %p43 = scmp.eq.s32.totalorder %s14, 1
    %p44 = por %p42, %p43
    %p45 = scmp.ne.s32.totalorder %s34, %s35
    %p46 = scmp.eq.s32.totalorder %s14, 0
    %p47 = por %p45, %p46
    %p48 = scmp.ne.s32.totalorder %s34, %s35
    %p49 = scmp.eq.s32.totalorder %s15, 1
    %p50 = por %p48, %p49
    %p52 = scmp.ne.s32.totalorder %s35, %s51
    %p53 = scmp.eq.s32.totalorder %s15, 0
    %p54 = por %p52, %p53
    %s55 = ssub.s32 %s17, %s24
    %p56 = scmp.eq.s32.totalorder %s55, 0
    %s58 = sadd.s32 %s57, 1
    %s59 = scalar_select %p56, %s57, %s58
    %p62 = pneg %p56
    %p63 = scmp.eq.s32.totalorder %s9, 1
    %p64 = por %p62, %p63
    %p65 = scmp.ne.s32.totalorder %s57, %s60
    %p66 = scmp.eq.s32.totalorder %s9, 0
    %p67 = por %p65, %p66
    %p68 = scmp.ne.s32.totalorder %s57, %s60
    %p69 = scmp.eq.s32.totalorder %s14, 1
    %p70 = por %p68, %p69
    %p71 = scmp.ne.s32.totalorder %s60, %s61
    %p72 = scmp.eq.s32.totalorder %s14, 0
    %p73 = por %p71, %p72
    %p74 = scmp.ne.s32.totalorder %s60, %s61
    %p75 = scmp.eq.s32.totalorder %s15, 1
    %p76 = por %p74, %p75
    %p78 = scmp.ne.s32.totalorder %s61, %s77
    %p79 = scmp.eq.s32.totalorder %s15, 0
    %p80 = por %p78, %p79
    %s81 = ssub.s32 %s17, %s24
    %p82 = scmp.eq.s32.totalorder %s81, 0
    %s84 = sadd.s32 %s83, 1
    %s85 = scalar_select %p82, %s83, %s84
    %p88 = pneg %p82
    %p89 = scmp.eq.s32.totalorder %s9, 1
    %p90 = por %p88, %p89
    %p91 = scmp.ne.s32.totalorder %s83, %s86
    %p92 = scmp.eq.s32.totalorder %s9, 0
    %p93 = por %p91, %p92
    %p94 = scmp.ne.s32.totalorder %s83, %s86
    %p95 = scmp.eq.s32.totalorder %s14, 1
    %p96 = por %p94, %p95
    %p97 = scmp.ne.s32.totalorder %s86, %s87
    %p98 = scmp.eq.s32.totalorder %s14, 0
    %p99 = por %p97, %p98
    %p100 = scmp.ne.s32.totalorder %s86, %s87
    %p101 = scmp.eq.s32.totalorder %s15, 1
    %p102 = por %p100, %p101
    %p104 = scmp.ne.s32.totalorder %s87, %s103
    %p105 = scmp.eq.s32.totalorder %s15, 0
    %p106 = por %p104, %p105
    %s107 = ssub.s32 %s16, %s28
    %s108 = ssub.s32 %s17, %s24
    %s109 = sor.u32 %s107, %s108
    %p110 = scmp.eq.s32.totalorder %s109, 0
    %s112 = sadd.s32 %s111, 1
    %s113 = scalar_select %p110, %s111, %s112
    %p116 = pneg %p110
    %p117 = scmp.eq.s32.totalorder %s9, 1
    %p118 = por %p116, %p117
    %p119 = scmp.ne.s32.totalorder %s111, %s114
    %p120 = scmp.eq.s32.totalorder %s9, 0
    %p121 = por %p119, %p120
    %p122 = scmp.ne.s32.totalorder %s111, %s114
    %p123 = scmp.eq.s32.totalorder %s14, 1
    %p124 = por %p122, %p123
    %p125 = scmp.ne.s32.totalorder %s114, %s115
    %p126 = scmp.eq.s32.totalorder %s14, 0
    %p127 = por %p125, %p126
    %p128 = scmp.ne.s32.totalorder %s114, %s115
    %p129 = scmp.eq.s32.totalorder %s15, 1
    %p130 = por %p128, %p129
    %p132 = scmp.ne.s32.totalorder %s115, %s131
    %p133 = scmp.eq.s32.totalorder %s15, 0
    %p134 = por %p132, %p133
    %p135 = scmp.le.s32.totalorder 1, %s9
    %p136 = scmp.lt.s32.totalorder %s9, 3
    %p137 = pnand %p135, %p136
    %p138 = pneg %p137
    // Predicated region
    $region9: #{_lambda_.1} parent=5 // pred_check
      _
    $region10: #{_lambda_.1} parent=5 // pred_check_branch
      %140 = sbr.rel (%p137) target = $region12
    $region11: #{_lambda_.1} parent=5 // pred_region
      %s141 = ssub.s32 %s9, 1
      // Predicated region
      $region13: #{_lambda_.1} parent=11 // pred_check
        %p142 = pneg %p73
      $region14: #{_lambda_.1} parent=11 // pred_check_branch
        %144 = sbr.rel (%p142) target = $region16
      $region15: #{_lambda_.1} parent=11 // pred_region
        %p145 = scmp.lt.s32.totalorder %s19, 0
        %s146 = scalar_select %p145, %s19, 0
        %s147 = smul.addr %s146, 4
        %s148 = scalar_lea.vmem %s1, %s147
      $region16: #{_lambda_.1} parent=11 // pred_fallthru
        _
      // Predicated region
      $region17: #{_lambda_.1} parent=11 // pred_check
        %p149 = pneg %p99
      $region18: #{_lambda_.1} parent=11 // pred_check_branch
        %151 = sbr.rel (%p149) target = $region20
      $region19: #{_lambda_.1} parent=11 // pred_region
        %p152 = scmp.lt.s32.totalorder %s19, 0
        %s153 = scalar_select %p152, %s19, 0
        %s154 = scalar_lea.vmem %s2, %s153
      $region20: #{_lambda_.1} parent=11 // pred_fallthru
        _
    $region12: #{_lambda_.1} parent=5 // pred_fallthru
      _
    %p155 = scmp.lt.s32.totalorder %s9, 2
    // Predicated region
    $region21: #{_lambda_.1} parent=5 // pred_check
      %p156 = pneg %p155
    $region22: #{_lambda_.1} parent=5 // pred_check_branch
      %158 = sbr.rel (%p156) target = $region24
    $region23: #{_lambda_.1} parent=5 // pred_region
      // Predicated region
      $region25: #{_lambda_.1} parent=23 // pred_check
        %p159 = pneg %p41
      $region26: #{_lambda_.1} parent=23 // pred_check_branch
        %161 = sbr.rel (%p159) target = $region28
      $region27: #{_lambda_.1} parent=23 // pred_region
        %s162 = smul.u32 32, %s16
        %p163 = scmp.lt.s32.totalorder %s162, 63
        %s164 = scalar_select %p163, %s162, 63
        %s165 = smul.addr %s164, 4
        %s166 = scalar_lea.vmem %s0, %s165
        %s167 = smul.u32 32, %s16
      $region28: #{_lambda_.1} parent=23 // pred_fallthru
        _
    $region24: #{_lambda_.1} parent=5 // pred_fallthru
      _
    %p168 = scmp.le.s32.totalorder 1, %s9
    %p169 = scmp.lt.s32.totalorder %s9, 3
    %p170 = pnand %p168, %p169
    %p171 = pneg %p170
    // Predicated region
    $region29: #{_lambda_.1} parent=5 // pred_check
      _
    $region30: #{_lambda_.1} parent=5 // pred_check_branch
      %173 = sbr.rel (%p170) target = $region32
    $region31: #{_lambda_.1} parent=5 // pred_region
      %s174 = ssub.s32 %s9, 1
      %s175 = smul.u32 32, %s18
      %p176 = scmp.lt.s32.totalorder %s175, 63
      %s177 = scalar_select %p176, %s175, 63
      %s178 = smul.addr %s177, 4
      %s179 = scalar_lea.vmem %s0, %s178
      %p180 = pneg %p47
      %p181 = pneg %p44
      %p182 = scmp.lt.s32.totalorder %s19, 0
      %s183 = scalar_select %p182, %s19, 0
      %s184 = smul.addr %s183, 4
      %s185 = scalar_lea.vmem %s1, %s184
      %p186 = pneg %p73
      %p187 = pneg %p70
      %p188 = scmp.lt.s32.totalorder %s19, 0
      %s189 = scalar_select %p188, %s19, 0
      %s190 = scalar_lea.vmem %s2, %s189
      %p191 = pneg %p99
      %p192 = pneg %p96
      %p193 = pneg %p127
      %p194 = pneg %p124
      %s195 = smul.u32 32, %s18
      %p196 = scmp.lt.s32.totalorder %s195, 63
      %s197 = scalar_select %p196, %s195, 63
      %p198 = scmp.lt.s32.totalorder %s19, 0
      %s199 = scalar_select %p198, %s19, 0
      %s200 = sadd.s32 %s199, %s197
      %s201 = smul.addr %s200, 8
      %s202 = scalar_lea.vmem %s3, %s201
      %s203 = smul.u32 32, %s18
      %p204 = scmp.lt.s32.totalorder %s203, 63
      %s205 = scalar_select %p204, %s203, 63
      %s206 = smul.addr %s205, 4
      %s207 = scalar_lea.vmem %s0, %s206
      %s208 = smul.u32 32, %s18
      %p209 = scmp.lt.s32.totalorder %s19, 0
      %s210 = scalar_select %p209, %s19, 0
      %s211 = smul.addr %s210, 4
      %s212 = scalar_lea.vmem %s1, %s211
      %p213 = scmp.lt.s32.totalorder %s19, 0
      %s214 = scalar_select %p213, %s19, 0
      %s215 = scalar_lea.vmem %s2, %s214
      %s216 = smul.u32 32, %s18
      %p217 = scmp.lt.s32.totalorder %s216, 63
      %s218 = scalar_select %p217, %s216, 63
      %p219 = scmp.lt.s32.totalorder %s19, 0
      %s220 = scalar_select %p219, %s19, 0
      %s221 = sadd.s32 %s220, %s218
      %s222 = smul.addr %s221, 8
      %s223 = scalar_lea.vmem %s3, %s222
      %s224 = smul.u32 32, %s18
      %v226 = vld [vmem:[%s207] sm:$0xf]
      %v227 = vld [vmem:[%s207 + $0x4] sm:$0xf]
      %v228 = vld [vmem:[%s207 + $0x8] sm:$0xf]
      %v229 = vld [vmem:[%s207 + $0xc] sm:$0xf]
      %v230 = vld [vmem:[%s207 + $0x10] sm:$0xf]
      %v231 = vld [vmem:[%s207 + $0x14] sm:$0xf]
      %v232 = vld [vmem:[%s207 + $0x18] sm:$0xf]
      %v233 = vld [vmem:[%s207 + $0x1c] sm:$0xf]
      %v234 = vld [vmem:[%s207 + $0x20] sm:$0xf]
      %v235 = vld [vmem:[%s207 + $0x24] sm:$0xf]
      %v236 = vld [vmem:[%s207 + $0x28] sm:$0xf]
      %v237 = vld [vmem:[%s207 + $0x2c] sm:$0xf]
      %v238 = vld [vmem:[%s207 + $0x30] sm:$0xf]
      %v239 = vld [vmem:[%s207 + $0x34] sm:$0xf]
      %v240 = vld [vmem:[%s207 + $0x38] sm:$0xf]
      %v241 = vld [vmem:[%s207 + $0x3c] sm:$0xf]
      %v242 = vld [vmem:[%s207 + $0x40] sm:$0xf]
      %v243 = vld [vmem:[%s207 + $0x44] sm:$0xf]
      %v244 = vld [vmem:[%s207 + $0x48] sm:$0xf]
      %v245 = vld [vmem:[%s207 + $0x4c] sm:$0xf]
      %v246 = vld [vmem:[%s207 + $0x50] sm:$0xf]
      %v247 = vld [vmem:[%s207 + $0x54] sm:$0xf]
      %v248 = vld [vmem:[%s207 + $0x58] sm:$0xf]
      %v249 = vld [vmem:[%s207 + $0x5c] sm:$0xf]
      %v250 = vld [vmem:[%s207 + $0x60] sm:$0xf]
      %v251 = vld [vmem:[%s207 + $0x64] sm:$0xf]
      %v252 = vld [vmem:[%s207 + $0x68] sm:$0xf]
      %v253 = vld [vmem:[%s207 + $0x6c] sm:$0xf]
      %v254 = vld [vmem:[%s207 + $0x70] sm:$0xf]
      %v255 = vld [vmem:[%s207 + $0x74] sm:$0xf]
      %v256 = vld [vmem:[%s207 + $0x78] sm:$0xf]
      %v257 = vld [vmem:[%s207 + $0x7c] sm:$0xf]
      %v258 = vld [vmem:[%s212] sm:$0xf]
      %v259 = vld [vmem:[%s215] sm:$0x1]
      %v261 = vlaneseq
      %v262 = vshrl.u32 %v261, 7
      %v263 = vsub.s32 0, %v262
      %v264 = vrot.slane %v259, %v263
      %v298 = vunpack.c.l.b16 %v226
      %v299 = vunpack.c.l.b16 %v227
      %v300 = vunpack.c.l.b16 %v228
      %v301 = vunpack.c.l.b16 %v229
      %v302 = vunpack.c.l.b16 %v230
      %v303 = vunpack.c.l.b16 %v231
      %v304 = vunpack.c.l.b16 %v232
      %v305 = vunpack.c.l.b16 %v233
      %v306 = vunpack.c.l.b16 %v234
      %v307 = vunpack.c.l.b16 %v235
      %v308 = vunpack.c.l.b16 %v236
      %v309 = vunpack.c.l.b16 %v237
      %v310 = vunpack.c.l.b16 %v238
      %v311 = vunpack.c.l.b16 %v239
      %v312 = vunpack.c.l.b16 %v240
      %v313 = vunpack.c.l.b16 %v241
      %v314 = vunpack.c.l.b16 %v242
      %v315 = vunpack.c.l.b16 %v243
      %v316 = vunpack.c.l.b16 %v244
      %v317 = vunpack.c.l.b16 %v245
      %v318 = vunpack.c.l.b16 %v246
      %v319 = vunpack.c.l.b16 %v247
      %v320 = vunpack.c.l.b16 %v248
      %v321 = vunpack.c.l.b16 %v249
      %v322 = vunpack.c.l.b16 %v250
      %v323 = vunpack.c.l.b16 %v251
      %v324 = vunpack.c.l.b16 %v252
      %v325 = vunpack.c.l.b16 %v253
      %v326 = vunpack.c.l.b16 %v254
      %v327 = vunpack.c.l.b16 %v255
      %v328 = vunpack.c.l.b16 %v256
      %v329 = vunpack.c.l.b16 %v257
      %v330 = vpack.c.b16 %v299, %v298
      %v331 = vpack.c.b16 %v301, %v300
      %v332 = vpack.c.b16 %v303, %v302
      %v333 = vpack.c.b16 %v305, %v304
      %v334 = vpack.c.b16 %v307, %v306
      %v335 = vpack.c.b16 %v309, %v308
      %v336 = vpack.c.b16 %v311, %v310
      %v337 = vpack.c.b16 %v313, %v312
      %v338 = vpack.c.b16 %v315, %v314
      %v339 = vpack.c.b16 %v317, %v316
      %v340 = vpack.c.b16 %v319, %v318
      %v341 = vpack.c.b16 %v321, %v320
      %v342 = vpack.c.b16 %v323, %v322
      %v343 = vpack.c.b16 %v325, %v324
      %v344 = vpack.c.b16 %v327, %v326
      %v345 = vpack.c.b16 %v329, %v328
      %vm346 = vcmask 64512
      %v348 = vsel %vm346, %v330, 0
      %v351 = vsel %vm346, %v331, 0
      %v354 = vsel %vm346, %v332, 0
      %v357 = vsel %vm346, %v333, 0
      %v360 = vsel %vm346, %v334, 0
      %v363 = vsel %vm346, %v335, 0
      %v366 = vsel %vm346, %v336, 0
      %v369 = vsel %vm346, %v337, 0
      %v372 = vsel %vm346, %v338, 0
      %v375 = vsel %vm346, %v339, 0
      %v378 = vsel %vm346, %v340, 0
      %v381 = vsel %vm346, %v341, 0
      %v384 = vsel %vm346, %v342, 0
      %v387 = vsel %vm346, %v343, 0
      %v390 = vsel %vm346, %v344, 0
      %v393 = vsel %vm346, %v345, 0
      %vm395 = vcmask 1043456
      %v397 = vsel %vm395, %v258, 0
      %399 = vmatprep.subr.bf16.mxu0 0
      %400 = vmatpush1.bf16.msra.mxu0 0
      %401 = vmatprep.subr.bf16.mxu0 0
      %402 = vmatpush1.bf16.msra.mxu0 0
      %403 = vmatprep.subr.bf16.mxu0 0
      %404 = vmatpush1.bf16.msra.mxu0 0
      %405 = vmatprep.subr.bf16.mxu0 0
      %406 = vmatpush1.bf16.msra.mxu0 0
      %407 = vmatprep.subr.bf16.mxu0 0
      %408 = vmatpush1.bf16.msra.mxu0 0
      %409 = vmatprep.subr.bf16.mxu0 0
      %410 = vmatpush1.bf16.msra.mxu0 0
      %411 = vmatprep.subr.bf16.mxu0 0
      %412 = vmatpush1.bf16.msra.mxu0 0
      %413 = vmatprep.subr.bf16.mxu0 0
      %414 = vmatpush1.bf16.msra.mxu0 %v397
      %415 = vmatprep.subr.bf16.mxu0 0
      %416 = vmatpush2.bf16.msra.mxu0 0
      %417 = vmatprep.subr.bf16.mxu0 0
      %418 = vmatpush2.bf16.msra.mxu0 0
      %419 = vmatprep.subr.bf16.mxu0 0
      %420 = vmatpush2.bf16.msra.mxu0 0
      %421 = vmatprep.subr.bf16.mxu0 0
      %422 = vmatpush2.bf16.msra.mxu0 0
      %423 = vmatprep.subr.bf16.mxu0 0
      %424 = vmatpush2.bf16.msra.mxu0 0
      %425 = vmatprep.subr.bf16.mxu0 0
      %426 = vmatpush2.bf16.msra.mxu0 0
      %427 = vmatprep.subr.bf16.mxu0 0
      %428 = vmatpush2.bf16.msra.mxu0 0
      %429 = vmatprep.subr.bf16.mxu0 0
      %430 = vmatpush2.bf16.msra.mxu0 0
      %431 = vmatprep.mubr.bf16.mxu0 0
      %432 = vmatmul.mubr.bf16.gmra.mxu0 %v348
      %v433 = vpop.f32.mrf.mxu0
      %v434 = vadd.f32 %v264, %v433
      %v435 = vpop.f32.mrf.mxu0
      %v436 = vpop.f32.mrf.mxu0
      %v437 = vadd.f32 %v264, %v436
      %v438 = vpop.f32.mrf.mxu0
      %439 = vmatprep.mubr.bf16.mxu0 0
      %440 = vmatmul.mubr.bf16.gmra.mxu0 %v351
      %v441 = vpop.f32.mrf.mxu0
      %v442 = vadd.f32 %v264, %v441
      %v443 = vpop.f32.mrf.mxu0
      %v444 = vpop.f32.mrf.mxu0
      %v445 = vadd.f32 %v264, %v444
      %v446 = vpop.f32.mrf.mxu0
      %447 = vmatprep.mubr.bf16.mxu0 0
      %448 = vmatmul.mubr.bf16.gmra.mxu0 %v354
      %v449 = vpop.f32.mrf.mxu0
      %v450 = vadd.f32 %v264, %v449
      %v451 = vpop.f32.mrf.mxu0
      %v452 = vpop.f32.mrf.mxu0
      %v453 = vadd.f32 %v264, %v452
      %v454 = vpop.f32.mrf.mxu0
      %455 = vmatprep.mubr.bf16.mxu0 0
      %456 = vmatmul.mubr.bf16.gmra.mxu0 %v357
      %v457 = vpop.f32.mrf.mxu0
      %v458 = vadd.f32 %v264, %v457
      %v459 = vpop.f32.mrf.mxu0
      %v460 = vpop.f32.mrf.mxu0
      %v461 = vadd.f32 %v264, %v460
      %v462 = vpop.f32.mrf.mxu0
      %463 = vmatprep.mubr.bf16.mxu0 0
      %464 = vmatmul.mubr.bf16.gmra.mxu0 %v360
      %v465 = vpop.f32.mrf.mxu0
      %v466 = vadd.f32 %v264, %v465
      %v467 = vpop.f32.mrf.mxu0
      %v468 = vpop.f32.mrf.mxu0
      %v469 = vadd.f32 %v264, %v468
      %v470 = vpop.f32.mrf.mxu0
      %471 = vmatprep.mubr.bf16.mxu0 0
      %472 = vmatmul.mubr.bf16.gmra.mxu0 %v363
      %v473 = vpop.f32.mrf.mxu0
      %v474 = vadd.f32 %v264, %v473
      %v475 = vpop.f32.mrf.mxu0
      %v476 = vpop.f32.mrf.mxu0
      %v477 = vadd.f32 %v264, %v476
      %v478 = vpop.f32.mrf.mxu0
      %479 = vmatprep.mubr.bf16.mxu0 0
      %480 = vmatmul.mubr.bf16.gmra.mxu0 %v366
      %v481 = vpop.f32.mrf.mxu0
      %v482 = vadd.f32 %v264, %v481
      %v483 = vpop.f32.mrf.mxu0
      %v484 = vpop.f32.mrf.mxu0
      %v485 = vadd.f32 %v264, %v484
      %v486 = vpop.f32.mrf.mxu0
      %487 = vmatprep.mubr.bf16.mxu0 0
      %488 = vmatmul.mubr.bf16.gmra.mxu0 %v369
      %v489 = vpop.f32.mrf.mxu0
      %v490 = vadd.f32 %v264, %v489
      %v491 = vpop.f32.mrf.mxu0
      %v492 = vpop.f32.mrf.mxu0
      %v493 = vadd.f32 %v264, %v492
      %v494 = vpop.f32.mrf.mxu0
      %495 = vmatprep.mubr.bf16.mxu0 0
      %496 = vmatmul.mubr.bf16.gmra.mxu0 %v372
      %v497 = vpop.f32.mrf.mxu0
      %v498 = vadd.f32 %v264, %v497
      %v499 = vpop.f32.mrf.mxu0
      %v500 = vpop.f32.mrf.mxu0
      %v501 = vadd.f32 %v264, %v500
      %v502 = vpop.f32.mrf.mxu0
      %503 = vmatprep.mubr.bf16.mxu0 0
      %504 = vmatmul.mubr.bf16.gmra.mxu0 %v375
      %v505 = vpop.f32.mrf.mxu0
      %v506 = vadd.f32 %v264, %v505
      %v507 = vpop.f32.mrf.mxu0
      %v508 = vpop.f32.mrf.mxu0
      %v509 = vadd.f32 %v264, %v508
      %v510 = vpop.f32.mrf.mxu0
      %511 = vmatprep.mubr.bf16.mxu0 0
      %512 = vmatmul.mubr.bf16.gmra.mxu0 %v378
      %v513 = vpop.f32.mrf.mxu0
      %v514 = vadd.f32 %v264, %v513
      %v515 = vpop.f32.mrf.mxu0
      %v516 = vpop.f32.mrf.mxu0
      %v517 = vadd.f32 %v264, %v516
      %v518 = vpop.f32.mrf.mxu0
      %519 = vmatprep.mubr.bf16.mxu0 0
      %520 = vmatmul.mubr.bf16.gmra.mxu0 %v381
      %v521 = vpop.f32.mrf.mxu0
      %v522 = vadd.f32 %v264, %v521
      %v523 = vpop.f32.mrf.mxu0
      %v524 = vpop.f32.mrf.mxu0
      %v525 = vadd.f32 %v264, %v524
      %v526 = vpop.f32.mrf.mxu0
      %527 = vmatprep.mubr.bf16.mxu0 0
      %528 = vmatmul.mubr.bf16.gmra.mxu0 %v384
      %v529 = vpop.f32.mrf.mxu0
      %v530 = vadd.f32 %v264, %v529
      %v531 = vpop.f32.mrf.mxu0
      %v532 = vpop.f32.mrf.mxu0
      %v533 = vadd.f32 %v264, %v532
      %v534 = vpop.f32.mrf.mxu0
      %535 = vmatprep.mubr.bf16.mxu0 0
      %536 = vmatmul.mubr.bf16.gmra.mxu0 %v387
      %v537 = vpop.f32.mrf.mxu0
      %v538 = vadd.f32 %v264, %v537
      %v539 = vpop.f32.mrf.mxu0
      %v540 = vpop.f32.mrf.mxu0
      %v541 = vadd.f32 %v264, %v540
      %v542 = vpop.f32.mrf.mxu0
      %543 = vmatprep.mubr.bf16.mxu0 0
      %544 = vmatmul.mubr.bf16.gmra.mxu0 %v390
      %v545 = vpop.f32.mrf.mxu0
      %v546 = vadd.f32 %v264, %v545
      %v547 = vpop.f32.mrf.mxu0
      %v548 = vpop.f32.mrf.mxu0
      %v549 = vadd.f32 %v264, %v548
      %v550 = vpop.f32.mrf.mxu0
      %551 = vmatprep.mubr.bf16.mxu0 0
      %552 = vmatmul.mubr.bf16.gmra.mxu0 %v393
      %v553 = vpop.f32.mrf.mxu0
      %v554 = vadd.f32 %v264, %v553
      %v555 = vpop.f32.mrf.mxu0
      %v556 = vpop.f32.mrf.mxu0
      %v557 = vadd.f32 %v264, %v556
      %v558 = vpop.f32.mrf.mxu0
      %559 = vdwg.mxu0
      %560 = vst.msk [vmem:[%s223] sm:$0xff] %vm346, %v434
      %561 = vst.msk [vmem:[%s223 + $0x8] sm:$0xff] %vm346, %v437
      %562 = vst.msk [vmem:[%s223 + $0x10] sm:$0xff] %vm346, %v442
      %563 = vst.msk [vmem:[%s223 + $0x18] sm:$0xff] %vm346, %v445
      %564 = vst.msk [vmem:[%s223 + $0x20] sm:$0xff] %vm346, %v450
      %565 = vst.msk [vmem:[%s223 + $0x28] sm:$0xff] %vm346, %v453
      %566 = vst.msk [vmem:[%s223 + $0x30] sm:$0xff] %vm346, %v458
      %567 = vst.msk [vmem:[%s223 + $0x38] sm:$0xff] %vm346, %v461
      %568 = vst.msk [vmem:[%s223 + $0x40] sm:$0xff] %vm346, %v466
      %569 = vst.msk [vmem:[%s223 + $0x48] sm:$0xff] %vm346, %v469
      %570 = vst.msk [vmem:[%s223 + $0x50] sm:$0xff] %vm346, %v474
      %571 = vst.msk [vmem:[%s223 + $0x58] sm:$0xff] %vm346, %v477
      %572 = vst.msk [vmem:[%s223 + $0x60] sm:$0xff] %vm346, %v482
      %573 = vst.msk [vmem:[%s223 + $0x68] sm:$0xff] %vm346, %v485
      %574 = vst.msk [vmem:[%s223 + $0x70] sm:$0xff] %vm346, %v490
      %575 = vst.msk [vmem:[%s223 + $0x78] sm:$0xff] %vm346, %v493
      %576 = vst.msk [vmem:[%s223 + $0x80] sm:$0xff] %vm346, %v498
      %577 = vst.msk [vmem:[%s223 + $0x88] sm:$0xff] %vm346, %v501
      %578 = vst.msk [vmem:[%s223 + $0x90] sm:$0xff] %vm346, %v506
      %579 = vst.msk [vmem:[%s223 + $0x98] sm:$0xff] %vm346, %v509
      %580 = vst.msk [vmem:[%s223 + $0xa0] sm:$0xff] %vm346, %v514
      %581 = vst.msk [vmem:[%s223 + $0xa8] sm:$0xff] %vm346, %v517
      %582 = vst.msk [vmem:[%s223 + $0xb0] sm:$0xff] %vm346, %v522
      %583 = vst.msk [vmem:[%s223 + $0xb8] sm:$0xff] %vm346, %v525
      %584 = vst.msk [vmem:[%s223 + $0xc0] sm:$0xff] %vm346, %v530
      %585 = vst.msk [vmem:[%s223 + $0xc8] sm:$0xff] %vm346, %v533
      %586 = vst.msk [vmem:[%s223 + $0xd0] sm:$0xff] %vm346, %v538
      %587 = vst.msk [vmem:[%s223 + $0xd8] sm:$0xff] %vm346, %v541
      %588 = vst.msk [vmem:[%s223 + $0xe0] sm:$0xff] %vm346, %v546
      %589 = vst.msk [vmem:[%s223 + $0xe8] sm:$0xff] %vm346, %v549
      %590 = vst.msk [vmem:[%s223 + $0xf0] sm:$0xff] %vm346, %v554
      %591 = vst.msk [vmem:[%s223 + $0xf8] sm:$0xff] %vm346, %v557
      %s592 = smul.u32 32, %s18
      %p593 = scmp.lt.s32.totalorder %s592, 63
      %s594 = scalar_select %p593, %s592, 63
      %p595 = scmp.lt.s32.totalorder %s19, 0
      %s596 = scalar_select %p595, %s19, 0
      %s597 = sadd.s32 %s596, %s594
      %s598 = smul.addr %s597, 8
      %s599 = scalar_lea.vmem %s3, %s598
      // Predicated region
      $region33: #{_lambda_.1} parent=31 // pred_check
        %p600 = pneg %p124
      $region34: #{_lambda_.1} parent=31 // pred_check_branch
        %602 = sbr.rel (%p600) target = $region36
      $region35: #{_lambda_.1} parent=31 // pred_region
        %s603 = smul.u32 32, %s18
      $region36: #{_lambda_.1} parent=31 // pred_fallthru
        _
    $region32: #{_lambda_.1} parent=5 // pred_fallthru
      _
    %p604 = scmp.le.s32.totalorder 2, %s9
    // Predicated region
    $region37: #{_lambda_.1} parent=5 // pred_check
      %p605 = pneg %p604
    $region38: #{_lambda_.1} parent=5 // pred_check_branch
      %607 = sbr.rel (%p605) target = $region40
    $region39: #{_lambda_.1} parent=5 // pred_region
      %s608 = ssub.s32 %s9, 2
      // Predicated region
      $region41: #{_lambda_.1} parent=39 // pred_check
        %p609 = pneg %p130
      $region42: #{_lambda_.1} parent=39 // pred_check_branch
        %611 = sbr.rel (%p609) target = $region44
      $region43: #{_lambda_.1} parent=39 // pred_region
        %s612 = smul.u32 32, %s20
        %p613 = scmp.lt.s32.totalorder %s612, 63
        %s614 = scalar_select %p613, %s612, 63
        %p615 = scmp.lt.s32.totalorder %s21, 0
        %s616 = scalar_select %p615, %s21, 0
        %s617 = sadd.s32 %s616, %s614
        %s618 = smul.addr %s617, 8
        %s619 = scalar_lea.vmem %s3, %s618
      $region44: #{_lambda_.1} parent=39 // pred_fallthru
        _
    $region40: #{_lambda_.1} parent=5 // pred_fallthru
      _
  $region6: #{_lambda_.1} parent=0 // loop_footer
    %s13 = sadd.s32 1, %s9
  $region7: #{_lambda_.1} parent=0 // loop_footer_branch
    %8 = sbr.rel target = $region3
  $region8: #{_lambda_.1} parent=0 // loop_exit
    _

</llo_original>
